<compile_context>
chip_gen: v7x
topology: tpu7x:2x2x1
jax: 0.10.0
libtpu: 0.0.40
codegen_flags: <defaults>
</compile_context>

<pallas_src>
import functools
import math

import jax
import jax.numpy as jnp
from jax import lax
from jax.experimental import pallas as pl
from jax.experimental.pallas import tpu as pltpu


def _vmem_limit_bytes():
    """Per-generation scoped-VMEM ceiling (keep headroom for double buffering)."""
    phys = 64 * 1024 * 1024
    try:
        phys = int(getattr(pltpu.get_tpu_info(), "vmem_capacity_bytes", phys))
    except Exception:
        pass  # fall back to the conservative v7x-safe default
    return max(32 * 1024 * 1024, min(int(phys * 0.85), 110 * 1024 * 1024))


def _tile(dim, pref, quantum):
    """Largest tile <= pref that divides `dim` and is a multiple of `quantum`
    (falls back to the full dim, which always satisfies the (8,128) rule)."""
    if dim <= pref:
        return dim
    t = (pref // quantum) * quantum
    while t >= quantum:
        if dim % t == 0:
            return t
        t -= quantum
    return dim


# --------------------- fused / tiled QKV projection -------------------------


def _linear_kernel(x_ref, w_ref, b_ref, o_ref, acc_ref):
    # x: (tm, tk) bf16, w: (tk, tn) bf16 (pre-transposed host-side), b: (1, tn) f32.
    # y = x @ w + b with an f32 VMEM accumulator over the K grid axis.
    @pl.when(pl.program_id(2) == 0)
    def _():
        acc_ref[...] = jnp.zeros_like(acc_ref)

    acc_ref[...] += jnp.dot(x_ref[...], w_ref[...],
                            preferred_element_type=jnp.float32)

    @pl.when(pl.program_id(2) == pl.num_programs(2) - 1)
    def _():
        o_ref[...] = (acc_ref[...] + b_ref[...]).astype(o_ref.dtype)


def linear(x, w_t, b, out_dtype):
    """Tiled y = x @ w_t + b.  x: (N, Din) bf16, w_t: (Din, Dout) bf16, b: (1, Dout) f32."""
    N, Din = x.shape
    Dout = w_t.shape[1]
    tm = _tile(N, 512, 128)       # 128 quantum: bf16 sublane packing + MXU alignment
    tn = _tile(Dout, 512, 128)
    tk = _tile(Din, 1024, 128)
    grid = (N // tm, Dout // tn, Din // tk)
    return pl.pallas_call(
        _linear_kernel,
        out_shape=jax.ShapeDtypeStruct((N, Dout), out_dtype),
        grid_spec=pltpu.PrefetchScalarGridSpec(
            num_scalar_prefetch=0,
            grid=grid,
            in_specs=[
                pl.BlockSpec((tm, tk), lambda i, j, k: (i, k)),
                pl.BlockSpec((tk, tn), lambda i, j, k: (k, j)),
                pl.BlockSpec((1, tn), lambda i, j, k: (0, j)),
            ],
            out_specs=pl.BlockSpec((tm, tn), lambda i, j, k: (i, j)),
            scratch_shapes=[pltpu.VMEM((tm, tn), jnp.float32)],
        ),
        compiler_params=pltpu.CompilerParams(
            dimension_semantics=("parallel", "parallel", "arbitrary"),
            vmem_limit_bytes=_vmem_limit_bytes(),
        ),
    )(x, w_t, b)


# ---------------- attention (q-tiled) + fused output projection -------------


def _attn_kernel(q_ref, k_ref, v_ref, wo_ref, bo_ref, o_ref, *rest,
                 num_heads, head_dim, scale, need_weights):
    # Per grid step (b, qi): q tile (tq, E); K/V (S, E) stay resident across qi;
    # wo^T (E, E) + bo (1, E) stay resident across the whole grid.
    pavg_ref = rest[0] if need_weights else None

    # Fold 1/sqrt(Dh) into q once (tq*E VPU mults instead of H*tq*S).
    q = (q_ref[...].astype(jnp.float32) * scale).astype(jnp.bfloat16)   # (tq, E)
    k = k_ref[...]                                                      # (S, E) bf16
    v = v_ref[...]                                                      # (S, E) bf16

    head_outs = []
    p_sum = None
    for h in range(num_heads):          # static unroll; heads are lane slices of vreg values
        sl = slice(h * head_dim, (h + 1) * head_dim)
        # Scores: contract the LAST dims of both operands (MXU-native q @ k^T form).
        s = lax.dot_general(q[:, sl], k[:, sl], (((1,), (1,)), ((), ())),
                            preferred_element_type=jnp.float32)         # (tq, S)
        s = s - jnp.max(s, axis=-1, keepdims=True)                      # stable softmax (f32)
        e = jnp.exp(s)
        p = e * pl.reciprocal(jnp.sum(e, axis=-1, keepdims=True), approx=True)
        if need_weights:
            p_sum = p if p_sum is None else p_sum + p
        head_outs.append(jnp.dot(p.astype(v.dtype), v[:, sl],
                                 preferred_element_type=jnp.float32))   # (tq, Dh) f32

    # Collect all heads into one lane-dense (tq, E) value, apply the FUSED
    # output projection, and issue a single lane-dense store.
    attn = jnp.concatenate(head_outs, axis=-1).astype(jnp.bfloat16)     # (tq, E)
    o = jnp.dot(attn, wo_ref[...], preferred_element_type=jnp.float32) + bo_ref[...]
    o_ref[...] = o.astype(o_ref.dtype)

    if need_weights:
        pavg_ref[...] = (p_sum * (1.0 / num_heads)).astype(pavg_ref.dtype)


def attention(qkv, wo_t, bo, tgt_len, bsz, embed_dim, num_heads, need_weights=True):
    # qkv: (L, B*3E) bf16 -- a free reshape of the fused QKV projection output.
    L, B, E = tgt_len, bsz, embed_dim
    head_dim = E // num_heads
    tq = _tile(L, 256, 8)
    kern = functools.partial(_attn_kernel, num_heads=num_heads, head_dim=head_dim,
                             scale=head_dim ** -0.5, need_weights=need_weights)

    out_shape = [jax.ShapeDtypeStruct((L, B * E), jnp.float32)]   # == (L, B, E)
    out_specs = [pl.BlockSpec((tq, E), lambda b, qi: (qi, b))]
    if need_weights:
        out_shape.append(jax.ShapeDtypeStruct((B, L, L), jnp.float32))
        out_specs.append(pl.BlockSpec((None, tq, L), lambda b, qi: (b, qi, 0)))

    res = pl.pallas_call(
        kern,
        out_shape=tuple(out_shape),
        grid_spec=pltpu.PrefetchScalarGridSpec(
            num_scalar_prefetch=0,
            grid=(B, L // tq),
            in_specs=[
                # The same (L, B*3E) array bound three times; column blocks are E wide.
                pl.BlockSpec((tq, E), lambda b, qi: (qi, 3 * b)),        # Q tile
                pl.BlockSpec((L, E), lambda b, qi: (0, 3 * b + 1)),      # K (resident over qi)
                pl.BlockSpec((L, E), lambda b, qi: (0, 3 * b + 2)),      # V (resident over qi)
                pl.BlockSpec((E, E), lambda b, qi: (0, 0)),              # wo^T (resident)
                pl.BlockSpec((1, E), lambda b, qi: (0, 0)),              # bo   (resident)
            ],
            out_specs=tuple(out_specs),
        ),
        compiler_params=pltpu.CompilerParams(
            dimension_semantics=("parallel", "parallel"),
            vmem_limit_bytes=_vmem_limit_bytes(),
        ),
    )(qkv, qkv, qkv, wo_t, bo)

    if need_weights:
        out2d, pavg = res
        return out2d, pavg
    (out2d,) = res
    return out2d, None


# --------------------------- module wrapper --------------------------------


def multihead_attention_forward(query, params, num_heads, need_weights=True):
    """Self-attention fast path of fairseq MultiheadAttention.forward.

    query: (tgt_len, bsz, embed_dim)  [Time x Batch x Channel]
    Returns (attn_out (tgt_len, bsz, embed_dim) f32,
             attn_weights averaged over heads (bsz, tgt_len, src_len) f32 or None).
    """
    L, B, E = query.shape
    assert E % num_heads == 0
    assert E % 128 == 0, "embed_dim must be a multiple of 128 for lane-dense layout"

    x2d = query.reshape(L * B, E).astype(jnp.bfloat16)        # free reshape + cast

    # Fused Q/K/V projection: one tiled matmul; activations read from HBM once.
    qkv = linear(x2d, params["w_qkv_t"], params["b_qkv"], jnp.bfloat16)  # (L*B, 3E)
    qkv = qkv.reshape(L, B * 3 * E)                            # free reshape

    # Attention (q-tiled) with the output projection fused in-kernel.
    out2d, attn_weights = attention(qkv, params["wo_t"], params["bo"],
                                    L, B, E, num_heads, need_weights)
    return out2d.reshape(L, B, E), attn_weights                # free reshape


# ------------------------ deterministic params ------------------------------


def xavier_uniform(key, shape, gain=1.0):
    fan_out, fan_in = shape
    a = gain * math.sqrt(6.0 / (fan_in + fan_out))
    return jax.random.uniform(key, shape, jnp.float32, -a, a)


def init_params(key, embed_dim):
    ks = jax.random.split(key, 7)
    g = 1.0 / math.sqrt(2.0)             # qkv_same_dim init in reset_parameters
    bound = 1.0 / math.sqrt(embed_dim)   # nn.Linear default bias init
    wq = xavier_uniform(ks[0], (embed_dim, embed_dim), g)
    wk = xavier_uniform(ks[1], (embed_dim, embed_dim), g)
    wv = xavier_uniform(ks[2], (embed_dim, embed_dim), g)
    wo = xavier_uniform(ks[3], (embed_dim, embed_dim), 1.0)
    bq = jax.random.uniform(ks[4], (embed_dim,), jnp.float32, -bound, bound)
    bk = jax.random.uniform(ks[5], (embed_dim,), jnp.float32, -bound, bound)
    bv = jax.random.uniform(ks[6], (embed_dim,), jnp.float32, -bound, bound)
    w_qkv = jnp.concatenate([wq, wk, wv], axis=0)              # (3E, E) torch layout
    return {
        # Weights pre-transposed ONCE host-side to (Din, Dout) so every kernel
        # matmul is a plain (m,k)x(k,n) contraction (no in-kernel transpose).
        "w_qkv_t": jnp.transpose(w_qkv).astype(jnp.bfloat16),  # (E, 3E) bf16
        "b_qkv": jnp.concatenate([bq, bk, bv])[None, :],       # (1, 3E) f32
        "wo_t": jnp.transpose(wo).astype(jnp.bfloat16),        # (E, E) bf16
        "bo": jnp.zeros((1, embed_dim), jnp.float32),          # out_proj.bias = 0
    }


# ------------------------------ reference -----------------------------------


def reference(query, params, num_heads):
    """Pure-JAX reference mirroring the kernel's bf16-operand / f32-accum math."""
    L, B, E = query.shape
    H, Dh = num_heads, E // num_heads
    scale = Dh ** -0.5
    x = query.reshape(L * B, E).astype(jnp.bfloat16)
    qkv = (jnp.dot(x, params["w_qkv_t"], preferred_element_type=jnp.float32)
           + params["b_qkv"]).astype(jnp.bfloat16)             # (L*B, 3E)
    qkv = qkv.reshape(L, B, 3, H, Dh)
    q = jnp.transpose(qkv[:, :, 0], (1, 2, 0, 3))              # (B, H, L, Dh) bf16
    k = jnp.transpose(qkv[:, :, 1], (1, 2, 0, 3))
    v = jnp.transpose(qkv[:, :, 2], (1, 2, 0, 3))
    q = (q.astype(jnp.float32) * scale).astype(jnp.bfloat16)   # scale folded into q
    s = jnp.einsum("bhld,bhmd->bhlm", q, k,
                   preferred_element_type=jnp.float32)
    p = jax.nn.softmax(s, axis=-1)                             # f32
    a = jnp.einsum("bhlm,bhmd->bhld", p.astype(jnp.bfloat16), v,
                   preferred_element_type=jnp.float32)         # f32
    a = jnp.transpose(a, (2, 0, 1, 3)).reshape(L * B, E).astype(jnp.bfloat16)
    out = (jnp.dot(a, params["wo_t"], preferred_element_type=jnp.float32)
           + params["bo"]).reshape(L, B, E)
    return out, jnp.mean(p, axis=1)                            # (B, L, L)


# -------------------------------- main --------------------------------------

if __name__ == "__main__":
    tgt_len, bsz, embed_dim, num_heads = 8, 2, 128, 4

    key = jax.random.PRNGKey(0)
    k_x, k_p = jax.random.split(key)
    # layout: (tgt_len, bsz, embed_dim) — Time x Batch x Channel
    query = jax.random.normal(k_x, (tgt_len, bsz, embed_dim), jnp.float32)
    params = init_params(k_p, embed_dim)

    out, attn_w = multihead_attention_forward(query, params, num_heads)
    out = jax.block_until_ready(out)
    attn_w = jax.block_until_ready(attn_w)

    ref_out, ref_w = reference(query, params, num_heads)
    assert out.shape == (tgt_len, bsz, embed_dim)
    assert attn_w.shape == (bsz, tgt_len, tgt_len)
    # bf16 MXU operands + approx reciprocal -> compare against the bf16-mirroring
    # reference with a matching tolerance.  Note: rows of attn_w may not sum to
    # exactly 1 because the softmax denominator uses pl.reciprocal(approx=True).
    assert jnp.allclose(out, ref_out, atol=5e-3, rtol=5e-3), \
        float(jnp.max(jnp.abs(out - ref_out)))
    assert jnp.allclose(attn_w, ref_w, atol=5e-3, rtol=5e-3), \
        float(jnp.max(jnp.abs(attn_w - ref_w)))

    print("KERNEL_OK")
</pallas_src>

<mosaic_0001>
module attributes {stable_mosaic.version = 11 : i64} {
  func.func @_linear_kernel(%arg0: i32, %arg1: i32, %arg2: i32, %arg3: memref<16x128xbf16, #tpu.memory_space<vmem>>, %arg4: memref<128x384xbf16, #tpu.memory_space<vmem>>, %arg5: memref<1x384xf32, #tpu.memory_space<vmem>>, %arg6: memref<16x384xbf16, #tpu.memory_space<vmem>>, %arg7: memref<16x384xf32, #tpu.memory_space<vmem>>) attributes {dimension_semantics = [#tpu.dimension_semantics<parallel>, #tpu.dimension_semantics<parallel>, #tpu.dimension_semantics<arbitrary>], iteration_bounds = array<i64: 1, 1, 1>, scalar_prefetch = 0 : i64, scratch_operands = 1 : i64, tpu.core_type = #tpu.core_type<tc>, window_params = [{transform_indices = @transform_0, window_bounds = array<i64: 16, 128>}, {transform_indices = @transform_1, window_bounds = array<i64: 128, 384>}, {transform_indices = @transform_2, window_bounds = array<i64: 1, 384>}, {transform_indices = @transform_3, window_bounds = array<i64: 16, 384>}]} {
    %c0_i32 = arith.constant 0 : i32
    %0 = arith.cmpi eq, %arg2, %c0_i32 : i32
    %1 = arith.extui %0 : i1 to i32
    %c0_i32_0 = arith.constant 0 : i32
    %2 = arith.cmpi ne, %1, %c0_i32_0 : i32
    scf.if %2 {
      %cst_10 = arith.constant 0.000000e+00 : f32
      %12 = vector.broadcast %cst_10 : f32 to vector<16x384xf32>
      %c0_11 = arith.constant 0 : index
      %c0_12 = arith.constant 0 : index
      %13 = vector.load %arg7[%c0_11, %c0_12] : memref<16x384xf32, #tpu.memory_space<vmem>>, vector<16x384xf32>
      tpu.vector_store %arg7[%c0_11, %c0_12], %12 {strides = array<i32>} : memref<16x384xf32, #tpu.memory_space<vmem>>, vector<16x384xf32>,
    } else {
    }
    %c0 = arith.constant 0 : index
    %c0_1 = arith.constant 0 : index
    %3 = vector.load %arg7[%c0, %c0_1] : memref<16x384xf32, #tpu.memory_space<vmem>>, vector<16x384xf32>
    %c0_2 = arith.constant 0 : index
    %c0_3 = arith.constant 0 : index
    %4 = vector.load %arg3[%c0_2, %c0_3] : memref<16x128xbf16, #tpu.memory_space<vmem>>, vector<16x128xbf16>
    %c0_4 = arith.constant 0 : index
    %c0_5 = arith.constant 0 : index
    %5 = vector.load %arg4[%c0_4, %c0_5] : memref<128x384xbf16, #tpu.memory_space<vmem>>, vector<128x384xbf16>
    %cst = arith.constant dense<0.000000e+00> : vector<16x384xf32>
    %6 = tpu.matmul %4, %5, %cst {dimension_numbers = #tpu.dot_dimension_numbers<[1], [0], [0], [1], [0, 0, 1, 1], [], []>} : vector<16x128xbf16>, vector<128x384xbf16>, vector<16x384xf32> -> vector<16x384xf32>
    %7 = arith.addf %3, %6 : vector<16x384xf32>
    %c0_6 = arith.constant 0 : index
    %c0_7 = arith.constant 0 : index
    %8 = vector.load %arg7[%c0_6, %c0_7] : memref<16x384xf32, #tpu.memory_space<vmem>>, vector<16x384xf32>
    tpu.vector_store %arg7[%c0_6, %c0_7], %7 {strides = array<i32>} : memref<16x384xf32, #tpu.memory_space<vmem>>, vector<16x384xf32>,
    %c0_i32_8 = arith.constant 0 : i32
    %9 = arith.cmpi eq, %arg2, %c0_i32_8 : i32
    %10 = arith.extui %9 : i1 to i32
    %c0_i32_9 = arith.constant 0 : i32
    %11 = arith.cmpi ne, %10, %c0_i32_9 : i32
    scf.if %11 {
      %c0_10 = arith.constant 0 : index
      %c0_11 = arith.constant 0 : index
      %12 = vector.load %arg7[%c0_10, %c0_11] : memref<16x384xf32, #tpu.memory_space<vmem>>, vector<16x384xf32>
      %c0_12 = arith.constant 0 : index
      %c0_13 = arith.constant 0 : index
      %13 = vector.load %arg5[%c0_12, %c0_13] : memref<1x384xf32, #tpu.memory_space<vmem>>, vector<1x384xf32>
      %14 = vector.broadcast %13 : vector<1x384xf32> to vector<16x384xf32>
      %15 = arith.addf %12, %14 : vector<16x384xf32>
      %16 = arith.truncf %15 : vector<16x384xf32> to vector<16x384xbf16>
      %c0_14 = arith.constant 0 : index
      %c0_15 = arith.constant 0 : index
      %17 = vector.load %arg6[%c0_14, %c0_15] : memref<16x384xbf16, #tpu.memory_space<vmem>>, vector<16x384xbf16>
      tpu.vector_store %arg6[%c0_14, %c0_15], %16 {strides = array<i32>} : memref<16x384xbf16, #tpu.memory_space<vmem>>, vector<16x384xbf16>,
    } else {
    }
    return
  }
  func.func @transform_0(%arg0: i32, %arg1: i32, %arg2: i32) -> (i32, i32) {
    %c0_i32 = arith.constant 0 : i32
    return %arg0, %arg2 : i32, i32
  }
  func.func @transform_1(%arg0: i32, %arg1: i32, %arg2: i32) -> (i32, i32) {
    %c0_i32 = arith.constant 0 : i32
    return %arg2, %arg1 : i32, i32
  }
  func.func @transform_2(%arg0: i32, %arg1: i32, %arg2: i32) -> (i32, i32) {
    %c0_i32 = arith.constant 0 : i32
    %c0_i32_0 = arith.constant 0 : i32
    return %c0_i32, %arg1 : i32, i32
  }
  func.func @transform_3(%arg0: i32, %arg1: i32, %arg2: i32) -> (i32, i32) {
    %c0_i32 = arith.constant 0 : i32
    return %arg0, %arg1 : i32, i32
  }
}

</mosaic_0001>

<llo_original>
// kernel: tpu_custom_call.1
$region0: #{tpu_custom_call.1}
  #allocation0 [shape = 'u32[]', space=smem, size = 0x4, offset = 0x4, fixed_abs, tag = 'smem constant byte address 0x4 - core index']
  #allocation1 [shape = 'u32[144,128]{1,0:T(1,128)}', space=vmem, size = 0x12000, scoped, tag = 'internal scratch']
  #allocation2 [shape = 'f32[16,384]{1,0:T(8,128)}', space=vmem, size = 0x6000, scoped, tag = 'scratch operand']
  %s0 = inlined_call_operand.hbm [shape: bf16[16,128], index: 0, kind: input, shape index: {}]
  %s1 = inlined_call_operand.hbm [shape: bf16[128,384], index: 1, kind: input, shape index: {}]
  %s2 = inlined_call_operand.vmem [shape: f32[1,384], index: 2, kind: input, shape index: {}]
  %s3 = inlined_call_operand.hbm [shape: bf16[16,384], index: 3, kind: output, shape index: {}]
  %s4 = sld [smem:[#allocation0]]
  $region38: #{tpu_custom_call.1} parent=0
    _
  %s6 = ssub.s32 1, %s4
  %s7 = scalar_select 0, %s6, %s4
  $region1: #{tpu_custom_call.1} parent=0
    #allocation3 [shape = 'u8[4096]{0}', space=vmem, size = 0x1000, scoped, tag = 'input window, operand 0, single buffered']
    #allocation4 [shape = 's32[1]{0}', space=sflag, size = 0x4, scoped, tag = 'scoped memory for tpu_custom_call.1']
    #allocation5 [shape = 's32[1]{0}', space=sflag, size = 0x4, scoped, tag = 'scoped memory for tpu_custom_call.1']
    #allocation6 [shape = 'u8[98304]{0}', space=vmem, size = 0x18000, scoped, tag = 'input window, operand 1, single buffered']
    #allocation7 [shape = 's32[1]{0}', space=sflag, size = 0x4, scoped, tag = 'scoped memory for tpu_custom_call.1']
    #allocation8 [shape = 'u8[12288]{0}', space=vmem, size = 0x3000, scoped, tag = 'output window, operand 0, single buffered']
    %8 = vsyncpa [#allocation4], 0
    %9 = vsyncpa [#allocation7], 0
    %10 = vsyncpa [#allocation5], 0
    // Predicated region
    $region2: #{tpu_custom_call.1} parent=1 // pred_check
      _
    $region3: #{tpu_custom_call.1} parent=1 // pred_check_branch
      %12 = sbr.rel (0) target = $region5
    $region4: #{tpu_custom_call.1} parent=1 // pred_region
      %s14 = ssub.s32 128, 128
      %15 = vsyncadd [#allocation4], %s14
      %s16 = sshll.u32 [#allocation3], 4
      %s17 = int_to_ptr.vmem [resolvable:$true] %s16
      %22 = dma.hbm_to_vmem [thread:$0]  %s0, 128, %s17, [#allocation4], 64, 64, 4
    $region5: #{tpu_custom_call.1} parent=1 // pred_fallthru
      _
    // Predicated region
    $region6: #{tpu_custom_call.1} parent=1 // pred_check
      _
    $region7: #{tpu_custom_call.1} parent=1 // pred_check_branch
      %24 = sbr.rel (0) target = $region9
    $region8: #{tpu_custom_call.1} parent=1 // pred_region
      %s26 = ssub.s32 3072, 3072
      %27 = vsyncadd [#allocation7], %s26
      %s28 = sshll.u32 [#allocation6], 4
      %s29 = int_to_ptr.vmem [resolvable:$true] %s28
      %34 = dma.hbm_to_vmem [thread:$0]  %s1, 3072, %s29, [#allocation7], 192, 192, 12
    $region9: #{tpu_custom_call.1} parent=1 // pred_fallthru
      _
    // Predicated region
    $region10: #{tpu_custom_call.1} parent=1 // pred_check
      _
    $region11: #{tpu_custom_call.1} parent=1 // pred_check_branch
      %36 = sbr.rel (0) target = $region13
    $region12: #{tpu_custom_call.1} parent=1 // pred_region
      _
    $region13: #{tpu_custom_call.1} parent=1 // pred_fallthru
      _
    // Predicated region
    $region14: #{tpu_custom_call.1} parent=1 // pred_check
      _
    $region15: #{tpu_custom_call.1} parent=1 // pred_check_branch
      %38 = sbr.rel (0) target = $region17
    $region16: #{tpu_custom_call.1} parent=1 // pred_region
      %39 = dma.done [#allocation4], 128
    $region17: #{tpu_custom_call.1} parent=1 // pred_fallthru
      _
    // Predicated region
    $region18: #{tpu_custom_call.1} parent=1 // pred_check
      _
    $region19: #{tpu_custom_call.1} parent=1 // pred_check_branch
      %41 = sbr.rel (0) target = $region21
    $region20: #{tpu_custom_call.1} parent=1 // pred_region
      %42 = dma.done [#allocation7], 3072
    $region21: #{tpu_custom_call.1} parent=1 // pred_fallthru
      _
    %p44 = scmp.eq.s32.totalorder 0, 0
    // Predicated region
    $region22: #{tpu_custom_call.1} parent=1 // pred_check
      %p45 = pneg %p44
    $region23: #{tpu_custom_call.1} parent=1 // pred_check_branch
      %47 = sbr.rel (%p45) target = $region25
    $region24: #{tpu_custom_call.1} parent=1 // pred_region
      %48 = vst [vmem:[#allocation2] sm:$0xff] 0.0
      %49 = vst [vmem:[#allocation2 + $0x8] sm:$0xff] 0.0
      %50 = vst [vmem:[#allocation2 + $0x10] sm:$0xff] 0.0
      %51 = vst [vmem:[#allocation2 + $0x18] sm:$0xff] 0.0
      %52 = vst [vmem:[#allocation2 + $0x20] sm:$0xff] 0.0
      %53 = vst [vmem:[#allocation2 + $0x28] sm:$0xff] 0.0
    $region25: #{tpu_custom_call.1} parent=1 // pred_fallthru
      _
    %v54 = vld [vmem:[#allocation2] sm:$0xff]
    %v55 = vld [vmem:[#allocation2 + $0x8] sm:$0xff]
    %v56 = vld [vmem:[#allocation2 + $0x10] sm:$0xff]
    %v57 = vld [vmem:[#allocation2 + $0x18] sm:$0xff]
    %v58 = vld [vmem:[#allocation2 + $0x20] sm:$0xff]
    %v59 = vld [vmem:[#allocation2 + $0x28] sm:$0xff]
    %v60 = vld [vmem:[#allocation3] sm:$0xf]
    %v61 = vld [vmem:[#allocation3 + $0x4] sm:$0xf]
    %v62 = vld [vmem:[#allocation6] sm:$0xff]
    %v63 = vld [vmem:[#allocation6 + $0x8] sm:$0xf]
    %v64 = vld [vmem:[#allocation6 + $0xc] sm:$0xff]
    %v65 = vld [vmem:[#allocation6 + $0x14] sm:$0xf]
    %v66 = vld [vmem:[#allocation6 + $0x18] sm:$0xff]
    %v67 = vld [vmem:[#allocation6 + $0x20] sm:$0xf]
    %v68 = vld [vmem:[#allocation6 + $0x24] sm:$0xff]
    %v69 = vld [vmem:[#allocation6 + $0x2c] sm:$0xf]
    %v70 = vld [vmem:[#allocation6 + $0x30] sm:$0xff]
    %v71 = vld [vmem:[#allocation6 + $0x38] sm:$0xf]
    %v72 = vld [vmem:[#allocation6 + $0x3c] sm:$0xff]
    %v73 = vld [vmem:[#allocation6 + $0x44] sm:$0xf]
    %v74 = vld [vmem:[#allocation6 + $0x48] sm:$0xff]
    %v75 = vld [vmem:[#allocation6 + $0x50] sm:$0xf]
    %v76 = vld [vmem:[#allocation6 + $0x54] sm:$0xff]
    %v77 = vld [vmem:[#allocation6 + $0x5c] sm:$0xf]
    %v78 = vld [vmem:[#allocation6 + $0x60] sm:$0xff]
    %v79 = vld [vmem:[#allocation6 + $0x68] sm:$0xf]
    %v80 = vld [vmem:[#allocation6 + $0x6c] sm:$0xff]
    %v81 = vld [vmem:[#allocation6 + $0x74] sm:$0xf]
    %v82 = vld [vmem:[#allocation6 + $0x78] sm:$0xff]
    %v83 = vld [vmem:[#allocation6 + $0x80] sm:$0xf]
    %v84 = vld [vmem:[#allocation6 + $0x84] sm:$0xff]
    %v85 = vld [vmem:[#allocation6 + $0x8c] sm:$0xf]
    %v86 = vld [vmem:[#allocation6 + $0x90] sm:$0xff]
    %v87 = vld [vmem:[#allocation6 + $0x98] sm:$0xf]
    %v88 = vld [vmem:[#allocation6 + $0x9c] sm:$0xff]
    %v89 = vld [vmem:[#allocation6 + $0xa4] sm:$0xf]
    %v90 = vld [vmem:[#allocation6 + $0xa8] sm:$0xff]
    %v91 = vld [vmem:[#allocation6 + $0xb0] sm:$0xf]
    %v92 = vld [vmem:[#allocation6 + $0xb4] sm:$0xff]
    %v93 = vld [vmem:[#allocation6 + $0xbc] sm:$0xf]
    %v96 = vunpack.c.l.b16 %v60
    %v97 = vunpack.c.l.b16 %v61
    %v98 = vpack.c.b16 %v97, %v96
    %v132 = vunpack.c.l.b16 %v62
    %v133 = vunpack.c.h.b16 %v62
    %v134 = vunpack.c.l.b16 %v63
    %v135 = vunpack.c.l.b16 %v64
    %v136 = vunpack.c.h.b16 %v64
    %v137 = vunpack.c.l.b16 %v65
    %v138 = vunpack.c.l.b16 %v66
    %v139 = vunpack.c.h.b16 %v66
    %v140 = vunpack.c.l.b16 %v67
    %v141 = vunpack.c.l.b16 %v68
    %v142 = vunpack.c.h.b16 %v68
    %v143 = vunpack.c.l.b16 %v69
    %v144 = vunpack.c.l.b16 %v70
    %v145 = vunpack.c.h.b16 %v70
    %v146 = vunpack.c.l.b16 %v71
    %v147 = vunpack.c.l.b16 %v72
    %v148 = vunpack.c.h.b16 %v72
    %v149 = vunpack.c.l.b16 %v73
    %v150 = vunpack.c.l.b16 %v74
    %v151 = vunpack.c.h.b16 %v74
    %v152 = vunpack.c.l.b16 %v75
    %v153 = vunpack.c.l.b16 %v76
    %v154 = vunpack.c.h.b16 %v76
    %v155 = vunpack.c.l.b16 %v77
    %v156 = vunpack.c.l.b16 %v78
    %v157 = vunpack.c.h.b16 %v78
    %v158 = vunpack.c.l.b16 %v79
    %v159 = vunpack.c.l.b16 %v80
    %v160 = vunpack.c.h.b16 %v80
    %v161 = vunpack.c.l.b16 %v81
    %v162 = vunpack.c.l.b16 %v82
    %v163 = vunpack.c.h.b16 %v82
    %v164 = vunpack.c.l.b16 %v83
    %v165 = vunpack.c.l.b16 %v84
    %v166 = vunpack.c.h.b16 %v84
    %v167 = vunpack.c.l.b16 %v85
    %v168 = vunpack.c.l.b16 %v86
    %v169 = vunpack.c.h.b16 %v86
    %v170 = vunpack.c.l.b16 %v87
    %v171 = vunpack.c.l.b16 %v88
    %v172 = vunpack.c.h.b16 %v88
    %v173 = vunpack.c.l.b16 %v89
    %v174 = vunpack.c.l.b16 %v90
    %v175 = vunpack.c.h.b16 %v90
    %v176 = vunpack.c.l.b16 %v91
    %v177 = vunpack.c.l.b16 %v92
    %v178 = vunpack.c.h.b16 %v92
    %v179 = vunpack.c.l.b16 %v93
    %v180 = vpack.c.b16 %v135, %v132
    %v181 = vpack.c.b16 %v136, %v133
    %v182 = vpack.c.b16 %v137, %v134
    %v183 = vpack.c.b16 %v141, %v138
    %v184 = vpack.c.b16 %v142, %v139
    %v185 = vpack.c.b16 %v143, %v140
    %v186 = vpack.c.b16 %v147, %v144
    %v187 = vpack.c.b16 %v148, %v145
    %v188 = vpack.c.b16 %v149, %v146
    %v189 = vpack.c.b16 %v153, %v150
    %v190 = vpack.c.b16 %v154, %v151
    %v191 = vpack.c.b16 %v155, %v152
    %v192 = vpack.c.b16 %v159, %v156
    %v193 = vpack.c.b16 %v160, %v157
    %v194 = vpack.c.b16 %v161, %v158
    %v195 = vpack.c.b16 %v165, %v162
    %v196 = vpack.c.b16 %v166, %v163
    %v197 = vpack.c.b16 %v167, %v164
    %v198 = vpack.c.b16 %v171, %v168
    %v199 = vpack.c.b16 %v172, %v169
    %v200 = vpack.c.b16 %v173, %v170
    %v201 = vpack.c.b16 %v177, %v174
    %v202 = vpack.c.b16 %v178, %v175
    %v203 = vpack.c.b16 %v179, %v176
    %228 = vmatprep.subr.bf16.mxu0 %v181
    %229 = vmatpush1.bf16.msra.mxu0 %v180
    %230 = vmatprep.subr.bf16.mxu0 %v184
    %231 = vmatpush1.bf16.msra.mxu0 %v183
    %232 = vmatprep.subr.bf16.mxu0 %v187
    %233 = vmatpush1.bf16.msra.mxu0 %v186
    %234 = vmatprep.subr.bf16.mxu0 %v190
    %235 = vmatpush1.bf16.msra.mxu0 %v189
    %236 = vmatprep.subr.bf16.mxu0 %v193
    %237 = vmatpush1.bf16.msra.mxu0 %v192
    %238 = vmatprep.subr.bf16.mxu0 %v196
    %239 = vmatpush1.bf16.msra.mxu0 %v195
    %240 = vmatprep.subr.bf16.mxu0 %v199
    %241 = vmatpush1.bf16.msra.mxu0 %v198
    %242 = vmatprep.subr.bf16.mxu0 %v202
    %243 = vmatpush1.bf16.msra.mxu0 %v201
    %244 = vmatprep.subr.bf16.mxu0 0
    %245 = vmatpush1.bf16.msra.mxu0 0
    %246 = vmatprep.subr.bf16.mxu0 0
    %247 = vmatpush1.bf16.msra.mxu0 0
    %248 = vmatprep.subr.bf16.mxu0 0
    %249 = vmatpush1.bf16.msra.mxu0 0
    %250 = vmatprep.subr.bf16.mxu0 0
    %251 = vmatpush1.bf16.msra.mxu0 0
    %252 = vmatprep.subr.bf16.mxu0 0
    %253 = vmatpush1.bf16.msra.mxu0 0
    %254 = vmatprep.subr.bf16.mxu0 0
    %255 = vmatpush1.bf16.msra.mxu0 0
    %256 = vmatprep.subr.bf16.mxu0 0
    %257 = vmatpush1.bf16.msra.mxu0 0
    %258 = vmatprep.subr.bf16.mxu0 0
    %259 = vmatpush1.bf16.msra.mxu0 0
    %260 = vmatprep.mubr.bf16.mxu0 0
    %261 = vmatmul.mubr.bf16.gmra.mrb[0].mxu0 %v98
    %v262 = vpop.f32.mrb[0].mxu0
    %v263 = vadd.f32 0.0, %v262
    %v264 = vpop.f32.mrb[0].mxu0
    %v265 = vadd.f32 0.0, %v264
    %v266 = vpop.f32.mrb[0].mxu0
    %v267 = vadd.f32 0.0, %v266
    %v268 = vpop.f32.mrb[0].mxu0
    %v269 = vadd.f32 0.0, %v268
    %270 = vdwg.mxu0
    %271 = vmatprep.subr.bf16.mxu0 0
    %272 = vmatpush1.bf16.msra.mxu0 %v182
    %273 = vmatprep.subr.bf16.mxu0 0
    %274 = vmatpush1.bf16.msra.mxu0 %v185
    %275 = vmatprep.subr.bf16.mxu0 0
    %276 = vmatpush1.bf16.msra.mxu0 %v188
    %277 = vmatprep.subr.bf16.mxu0 0
    %278 = vmatpush1.bf16.msra.mxu0 %v191
    %279 = vmatprep.subr.bf16.mxu0 0
    %280 = vmatpush1.bf16.msra.mxu0 %v194
    %281 = vmatprep.subr.bf16.mxu0 0
    %282 = vmatpush1.bf16.msra.mxu0 %v197
    %283 = vmatprep.subr.bf16.mxu0 0
    %284 = vmatpush1.bf16.msra.mxu0 %v200
    %285 = vmatprep.subr.bf16.mxu0 0
    %286 = vmatpush1.bf16.msra.mxu0 %v203
    %287 = vmatprep.subr.bf16.mxu0 0
    %288 = vmatpush1.bf16.msra.mxu0 0
    %289 = vmatprep.subr.bf16.mxu0 0
    %290 = vmatpush1.bf16.msra.mxu0 0
    %291 = vmatprep.subr.bf16.mxu0 0
    %292 = vmatpush1.bf16.msra.mxu0 0
    %293 = vmatprep.subr.bf16.mxu0 0
    %294 = vmatpush1.bf16.msra.mxu0 0
    %295 = vmatprep.subr.bf16.mxu0 0
    %296 = vmatpush1.bf16.msra.mxu0 0
    %297 = vmatprep.subr.bf16.mxu0 0
    %298 = vmatpush1.bf16.msra.mxu0 0
    %299 = vmatprep.subr.bf16.mxu0 0
    %300 = vmatpush1.bf16.msra.mxu0 0
    %301 = vmatprep.subr.bf16.mxu0 0
    %302 = vmatpush1.bf16.msra.mxu0 0
    %303 = vmatprep.mubr.bf16.mxu0 0
    %304 = vmatmul.mubr.bf16.gmra.mrb[0].mxu0 %v98
    %v305 = vpop.f32.mrb[0].mxu0
    %v306 = vadd.f32 0.0, %v305
    %v307 = vpop.f32.mrb[0].mxu0
    %v308 = vpop.f32.mrb[0].mxu0
    %v309 = vadd.f32 0.0, %v308
    %v310 = vpop.f32.mrb[0].mxu0
    %311 = vdwg.mxu0
    %v312 = vadd.f32 %v54, %v263
    %v313 = vadd.f32 %v55, %v265
    %v314 = vadd.f32 %v56, %v306
    %v315 = vadd.f32 %v57, %v267
    %v316 = vadd.f32 %v58, %v269
    %v317 = vadd.f32 %v59, %v309
    %318 = vst [vmem:[#allocation2] sm:$0xff] %v312
    %319 = vst [vmem:[#allocation2 + $0x8] sm:$0xff] %v313
    %320 = vst [vmem:[#allocation2 + $0x10] sm:$0xff] %v314
    %321 = vst [vmem:[#allocation2 + $0x18] sm:$0xff] %v315
    %322 = vst [vmem:[#allocation2 + $0x20] sm:$0xff] %v316
    %323 = vst [vmem:[#allocation2 + $0x28] sm:$0xff] %v317
    // Predicated region
    $region26: #{tpu_custom_call.1} parent=1 // pred_check
      %p324 = pneg %p44
    $region27: #{tpu_custom_call.1} parent=1 // pred_check_branch
      %326 = sbr.rel (%p324) target = $region29
    $region28: #{tpu_custom_call.1} parent=1 // pred_region
      %v327 = vld [vmem:[#allocation2] sm:$0xff]
      %v328 = vld [vmem:[#allocation2 + $0x8] sm:$0xff]
      %v329 = vld [vmem:[#allocation2 + $0x10] sm:$0xff]
      %v330 = vld [vmem:[#allocation2 + $0x18] sm:$0xff]
      %v331 = vld [vmem:[#allocation2 + $0x20] sm:$0xff]
      %v332 = vld [vmem:[#allocation2 + $0x28] sm:$0xff]
      %v333 = vld [vmem:[%s2] sm:$0x7]
      %v335 = vlaneseq
      %v336 = vshrl.u32 %v335, 7
      %v337 = vsub.s32 0, %v336
      %v338 = vrot.slane %v333, %v337
      %v339 = vlaneseq
      %v340 = vshrl.u32 %v339, 7
      %v341 = vsub.s32 1, %v340
      %v342 = vrot.slane %v333, %v341
      %v343 = vlaneseq
      %v344 = vshrl.u32 %v343, 7
      %v345 = vsub.s32 2, %v344
      %v346 = vrot.slane %v333, %v345
      %v350 = vadd.f32 %v327, %v338
      %v351 = vadd.f32 %v328, %v342
      %v352 = vadd.f32 %v329, %v346
      %v353 = vadd.f32 %v330, %v338
      %v354 = vadd.f32 %v331, %v342
      %v355 = vadd.f32 %v332, %v346
      %v356 = vpack.c.bf16 %v353, %v350
      %v357 = vpack.c.bf16 %v354, %v351
      %v358 = vpack.c.bf16 %v355, %v352
      %v362 = vunpack.c.l.b16 %v356
      %v363 = vunpack.c.l.b16 %v357
      %v364 = vunpack.c.l.b16 %v358
      %v365 = vunpack.c.h.b16 %v356
      %v366 = vunpack.c.h.b16 %v357
      %v367 = vunpack.c.h.b16 %v358
      %v368 = vpack.c.b16 %v363, %v362
      %v369 = vpack.c.b16 %v364, %v364
      %v370 = vpack.c.b16 %v366, %v365
      %v371 = vpack.c.b16 %v367, %v367
      %376 = vst [vmem:[#allocation8] sm:$0xff] %v368
      %377 = vst [vmem:[#allocation8 + $0x8] sm:$0xf] %v369
      %378 = vst [vmem:[#allocation8 + $0xc] sm:$0xff] %v370
      %379 = vst [vmem:[#allocation8 + $0x14] sm:$0xf] %v371
    $region29: #{tpu_custom_call.1} parent=1 // pred_fallthru
      _
    // Predicated region
    $region30: #{tpu_custom_call.1} parent=1 // pred_check
      _
    $region31: #{tpu_custom_call.1} parent=1 // pred_check_branch
      %381 = sbr.rel (0) target = $region33
    $region32: #{tpu_custom_call.1} parent=1 // pred_region
      %s383 = ssub.s32 384, 384
      %384 = vsyncadd [#allocation5], %s383
      %s385 = sshll.u32 [#allocation8], 4
      %s386 = int_to_ptr.vmem [resolvable:$true] %s385
      %391 = dma.vmem_to_hbm [thread:$0]  %s386, 384, %s3, [#allocation5], 192, 192, 12
    $region33: #{tpu_custom_call.1} parent=1 // pred_fallthru
      _
    // Predicated region
    $region34: #{tpu_custom_call.1} parent=1 // pred_check
      _
    $region35: #{tpu_custom_call.1} parent=1 // pred_check_branch
      %393 = sbr.rel (0) target = $region37
    $region36: #{tpu_custom_call.1} parent=1 // pred_region
      %394 = dma.done [#allocation5], 384
    $region37: #{tpu_custom_call.1} parent=1 // pred_fallthru
      _
    %395 = vsyncpa [#allocation4], 1
    %396 = vsyncpa [#allocation7], 1
    %397 = vsyncpa [#allocation5], 1

</llo_original>
